<compile_context>
chip_gen: v7x
topology: tpu7x:2x2x1
jax: 0.10.0
libtpu: 0.0.40
codegen_flags: <defaults>
</compile_context>

<pallas_src>
import jax
import jax.numpy as jnp
from jax import lax
from jax.experimental import pallas as pl
from jax.experimental.pallas import tpu as pltpu


def approach_net_kernel(x_ref, w1_ref, b1_ref, w2_ref, b2_ref, g_ref,
                        res_ref, score_ref, inds_ref):
    # Per-grid-step view: one batch element (batch dim squeezed away by BlockSpec).
    x = x_ref[...]                                             # (C, N) f32

    # ---- conv1 (1x1) + bias + ReLU: channel matmul on the MXU (bf16 in, f32 acc).
    res = jnp.dot(w1_ref[...].astype(jnp.bfloat16),
                  x.astype(jnp.bfloat16),
                  preferred_element_type=jnp.float32)          # (C, N)
    res = jnp.maximum(res + b1_ref[...], 0.0)                  # bias + ReLU (VPU, f32)
    res_ref[...] = res.astype(res_ref.dtype)

    # ---- conv2 (1x1) fused with transpose(1, 2): contract channel dim 0 of `res`
    # with dim 0 of the pre-transposed (C, V) weight -> (N, V) directly, no XLU
    # transpose of the activations.
    score = lax.dot_general(
        res.astype(jnp.bfloat16), w2_ref[...].astype(jnp.bfloat16),
        dimension_numbers=(((0,), (0,)), ((), ())),
        preferred_element_type=jnp.float32) + b2_ref[...]      # (N, V) f32
    score_ref[...] = score.astype(score_ref.dtype)

    # ---- training path: per-seed min-max normalization + multinomial(1) via
    # the Gumbel-max trick (gumbel noise supplied by the caller).
    vmax = jnp.max(score, axis=-1, keepdims=True)              # (N, 1)
    vmin = jnp.min(score, axis=-1, keepdims=True)              # (N, 1)
    w = (score - vmin) / (vmax - vmin + 1e-8)                  # (N, V), weights >= 0
    z = jnp.where(w > 0.0, jnp.log(w), -jnp.inf) + g_ref[...]  # (N, V)
    zmax = jnp.max(z, axis=-1, keepdims=True)                  # (N, 1)
    num_view = z.shape[-1]
    col = lax.broadcasted_iota(jnp.int32, z.shape, 1).astype(jnp.float32)
    # first index attaining the row max == categorical sample with probs ∝ w.
    idx = jnp.min(jnp.where(z >= zmax, col, float(num_view)),
                  axis=-1, keepdims=True)                      # (N, 1) f32
    inds_ref[...] = idx.astype(jnp.int32)


def approach_net(seed_features, params, gumbel_noise):
    """Training-mode ApproachNet forward. Returns (end_points, res_features)."""
    B, C, N = seed_features.shape
    V = params['w2'].shape[1]
    assert gumbel_noise.shape == (B, N, V)

    flops = 2 * B * N * C * (C + V)          # the two 1x1-conv matmuls
    transcendentals = B * N * V              # jnp.log in the sampling path
    bytes_accessed = 4 * (seed_features.size + params['w1'].size +
                          params['b1'].size + params['w2'].size +
                          params['b2'].size + gumbel_noise.size +
                          B * C * N + B * N * V + B * N)

    grid_spec = pltpu.PrefetchScalarGridSpec(
        num_scalar_prefetch=0,
        grid=(B,),
        in_specs=[
            pl.BlockSpec((None, C, N), lambda b: (b, 0, 0)),   # seed_features
            pl.BlockSpec((C, C), lambda b: (0, 0)),            # conv1 weight
            pl.BlockSpec((C, 1), lambda b: (0, 0)),            # conv1 bias
            pl.BlockSpec((C, V), lambda b: (0, 0)),            # conv2 weight (pre-transposed)
            pl.BlockSpec((1, V), lambda b: (0, 0)),            # conv2 bias
            pl.BlockSpec((None, N, V), lambda b: (b, 0, 0)),   # gumbel noise
        ],
        out_specs=[
            pl.BlockSpec((None, C, N), lambda b: (b, 0, 0)),   # res_features
            pl.BlockSpec((None, N, V), lambda b: (b, 0, 0)),   # view_score
            pl.BlockSpec((None, N, 1), lambda b: (b, 0, 0)),   # top_view_inds
        ],
    )

    res_features, view_score, inds = pl.pallas_call(
        approach_net_kernel,
        out_shape=(
            jax.ShapeDtypeStruct((B, C, N), seed_features.dtype),
            jax.ShapeDtypeStruct((B, N, V), jnp.float32),
            jax.ShapeDtypeStruct((B, N, 1), jnp.int32),
        ),
        grid_spec=grid_spec,
        compiler_params=pltpu.CompilerParams(
            dimension_semantics=("parallel",)),
        cost_estimate=pl.CostEstimate(
            flops=flops, transcendentals=transcendentals,
            bytes_accessed=bytes_accessed),
    )(seed_features, params['w1'], params['b1'], params['w2'], params['b2'],
      gumbel_noise)

    end_points = {
        'view_score': view_score,                 # (B, num_seed, num_view)
        'grasp_top_view_inds': inds[..., 0],      # (B, num_seed)
    }
    return end_points, res_features


def approach_net_ref(seed_features, params, gumbel_noise):
    """Pure-JAX reference mirroring the kernel (bf16 MXU operands, f32 accum)."""
    w1, b1 = params['w1'], params['b1']
    w2, b2 = params['w2'], params['b2']
    x = seed_features
    res = jnp.einsum('oc,bcn->bon',
                     w1.astype(jnp.bfloat16), x.astype(jnp.bfloat16),
                     preferred_element_type=jnp.float32) + b1[None]
    res = jnp.maximum(res, 0.0)                                   # (B, C, N)
    score = jnp.einsum('bcn,cv->bnv',
                       res.astype(jnp.bfloat16), w2.astype(jnp.bfloat16),
                       preferred_element_type=jnp.float32) + b2[None]  # (B, N, V)
    vmax = jnp.max(score, axis=-1, keepdims=True)
    vmin = jnp.min(score, axis=-1, keepdims=True)
    w = (score - vmin) / (vmax - vmin + 1e-8)
    z = jnp.where(w > 0.0, jnp.log(w), -jnp.inf) + gumbel_noise
    inds = jnp.argmax(z, axis=-1)
    return res, score, inds


def init_params(key, channels, num_view):
    """Conv1d weights with the 1-length kernel dim squeezed; conv2 weight is
    stored pre-transposed as (C_in, num_view) for MXU-native consumption."""
    k1, k2, k3, k4 = jax.random.split(key, 4)
    s = 0.1
    return {
        'w1': s * jax.random.normal(k1, (channels, channels), jnp.float32),
        'b1': s * jax.random.normal(k2, (channels, 1), jnp.float32),
        'w2': s * jax.random.normal(k3, (channels, num_view), jnp.float32),
        'b2': s * jax.random.normal(k4, (1, num_view), jnp.float32),
    }


if __name__ == "__main__":
    B, C, N, V = 2, 32, 128, 16        # batch, seed_feature_dim, num_seed, num_view
    key = jax.random.PRNGKey(0)
    kx, kp, kg = jax.random.split(key, 3)
    x = jax.random.normal(kx, (B, C, N), jnp.float32)
    params = init_params(kp, C, V)
    gumbel = jax.random.gumbel(kg, (B, N, V), jnp.float32)

    end_points, res_features = approach_net(x, params, gumbel)
    res_features = jax.block_until_ready(res_features)
    view_score = jax.block_until_ready(end_points['view_score'])
    top_inds = jax.block_until_ready(end_points['grasp_top_view_inds'])

    res_ref, score_ref, inds_ref = approach_net_ref(x, params, gumbel)

    assert res_features.shape == (B, C, N)
    assert view_score.shape == (B, N, V)
    assert top_inds.shape == (B, N)
    assert jnp.allclose(res_features, res_ref, atol=1e-4, rtol=1e-4), float(
        jnp.max(jnp.abs(res_features - res_ref)))
    assert jnp.allclose(view_score, score_ref, atol=1e-4, rtol=1e-4), float(
        jnp.max(jnp.abs(view_score - score_ref)))
    # Indices come from the stochastic sampling path; allow for float-noise tie
    # flips (kernel EUP log/div vs XLA) while still catching any real bug
    # (a wrong implementation would match at ~1/num_view).
    match_frac = float(jnp.mean((top_inds == inds_ref).astype(jnp.float32)))
    assert match_frac >= 0.99, match_frac
    assert int(jnp.min(top_inds)) >= 0 and int(jnp.max(top_inds)) < V
    print("KERNEL_OK")
</pallas_src>

<mosaic_0001>
module attributes {stable_mosaic.version = 11 : i64} {
  func.func @approach_net_kernel(%arg0: i32, %arg1: memref<1x32x128xf32, #tpu.memory_space<vmem>>, %arg2: memref<32x32xf32, #tpu.memory_space<vmem>>, %arg3: memref<32x1xf32, #tpu.memory_space<vmem>>, %arg4: memref<32x16xf32, #tpu.memory_space<vmem>>, %arg5: memref<1x16xf32, #tpu.memory_space<vmem>>, %arg6: memref<1x128x16xf32, #tpu.memory_space<vmem>>, %arg7: memref<1x32x128xf32, #tpu.memory_space<vmem>>, %arg8: memref<1x128x16xf32, #tpu.memory_space<vmem>>, %arg9: memref<1x128x1xi32, #tpu.memory_space<vmem>>) attributes {dimension_semantics = [#tpu.dimension_semantics<parallel>], iteration_bounds = array<i64: 2>, scalar_prefetch = 0 : i64, scratch_operands = 0 : i64, tpu.core_type = #tpu.core_type<tc>, window_params = [{transform_indices = @transform_0, window_bounds = array<i64: 1, 32, 128>}, {pipeline_mode = #tpu.pipeline_mode<synchronous>, transform_indices = @transform_1, window_bounds = array<i64: 32, 32>}, {pipeline_mode = #tpu.pipeline_mode<synchronous>, transform_indices = @transform_2, window_bounds = array<i64: 32, 1>}, {pipeline_mode = #tpu.pipeline_mode<synchronous>, transform_indices = @transform_3, window_bounds = array<i64: 32, 16>}, {pipeline_mode = #tpu.pipeline_mode<synchronous>, transform_indices = @transform_4, window_bounds = array<i64: 1, 16>}, {transform_indices = @transform_5, window_bounds = array<i64: 1, 128, 16>}, {transform_indices = @transform_6, window_bounds = array<i64: 1, 32, 128>}, {transform_indices = @transform_7, window_bounds = array<i64: 1, 128, 16>}, {transform_indices = @transform_8, window_bounds = array<i64: 1, 128, 1>}]} {
    %c0 = arith.constant 0 : index
    %c0_0 = arith.constant 0 : index
    %c0_1 = arith.constant 0 : index
    %0 = vector.load %arg1[%c0, %c0_0, %c0_1] : memref<1x32x128xf32, #tpu.memory_space<vmem>>, vector<1x32x128xf32>
    %1 = vector.shape_cast %0 : vector<1x32x128xf32> to vector<32x128xf32>
    %c0_2 = arith.constant 0 : index
    %c0_3 = arith.constant 0 : index
    %2 = vector.load %arg2[%c0_2, %c0_3] : memref<32x32xf32, #tpu.memory_space<vmem>>, vector<32x32xf32>
    %3 = arith.truncf %2 : vector<32x32xf32> to vector<32x32xbf16>
    %4 = arith.truncf %1 : vector<32x128xf32> to vector<32x128xbf16>
    %cst = arith.constant dense<0.000000e+00> : vector<32x128xf32>
    %5 = tpu.matmul %3, %4, %cst {dimension_numbers = #tpu.dot_dimension_numbers<[1], [0], [0], [1], [0, 0, 1, 1], [], []>} : vector<32x32xbf16>, vector<32x128xbf16>, vector<32x128xf32> -> vector<32x128xf32>
    %c0_4 = arith.constant 0 : index
    %c0_5 = arith.constant 0 : index
    %6 = vector.load %arg3[%c0_4, %c0_5] : memref<32x1xf32, #tpu.memory_space<vmem>>, vector<32x1xf32>
    %7 = vector.broadcast %6 : vector<32x1xf32> to vector<32x128xf32>
    %8 = arith.addf %5, %7 : vector<32x128xf32>
    %cst_6 = arith.constant 0.000000e+00 : f32
    %9 = vector.broadcast %cst_6 : f32 to vector<32x128xf32>
    %10 = arith.maximumf %8, %9 : vector<32x128xf32>
    %c0_7 = arith.constant 0 : index
    %c0_8 = arith.constant 0 : index
    %c0_9 = arith.constant 0 : index
    %11 = vector.load %arg7[%c0_7, %c0_8, %c0_9] : memref<1x32x128xf32, #tpu.memory_space<vmem>>, vector<1x32x128xf32>
    %12 = vector.shape_cast %11 : vector<1x32x128xf32> to vector<32x128xf32>
    %13 = vector.shape_cast %10 : vector<32x128xf32> to vector<1x32x128xf32>
    tpu.vector_store %arg7[%c0_7, %c0_8, %c0_9], %13 {strides = array<i32>} : memref<1x32x128xf32, #tpu.memory_space<vmem>>, vector<1x32x128xf32>,
    %14 = arith.truncf %10 : vector<32x128xf32> to vector<32x128xbf16>
    %c0_10 = arith.constant 0 : index
    %c0_11 = arith.constant 0 : index
    %15 = vector.load %arg4[%c0_10, %c0_11] : memref<32x16xf32, #tpu.memory_space<vmem>>, vector<32x16xf32>
    %16 = arith.truncf %15 : vector<32x16xf32> to vector<32x16xbf16>
    %cst_12 = arith.constant dense<0.000000e+00> : vector<128x16xf32>
    %17 = tpu.matmul %14, %16, %cst_12 {dimension_numbers = #tpu.dot_dimension_numbers<[0], [0], [1], [1], [0, 1, 1, 1], [], []>} : vector<32x128xbf16>, vector<32x16xbf16>, vector<128x16xf32> -> vector<128x16xf32>
    %c0_13 = arith.constant 0 : index
    %c0_14 = arith.constant 0 : index
    %18 = vector.load %arg5[%c0_13, %c0_14] : memref<1x16xf32, #tpu.memory_space<vmem>>, vector<1x16xf32>
    %19 = vector.broadcast %18 : vector<1x16xf32> to vector<128x16xf32>
    %20 = arith.addf %17, %19 : vector<128x16xf32>
    %c0_15 = arith.constant 0 : index
    %c0_16 = arith.constant 0 : index
    %c0_17 = arith.constant 0 : index
    %21 = vector.load %arg8[%c0_15, %c0_16, %c0_17] : memref<1x128x16xf32, #tpu.memory_space<vmem>>, vector<1x128x16xf32>
    %22 = vector.shape_cast %21 : vector<1x128x16xf32> to vector<128x16xf32>
    %23 = vector.shape_cast %20 : vector<128x16xf32> to vector<1x128x16xf32>
    tpu.vector_store %arg8[%c0_15, %c0_16, %c0_17], %23 {strides = array<i32>} : memref<1x128x16xf32, #tpu.memory_space<vmem>>, vector<1x128x16xf32>,
    %cst_18 = arith.constant dense<0xFF800000> : vector<128xf32>
    %24 = vector.multi_reduction <maximumf>, %20, %cst_18 [1] : vector<128x16xf32> to vector<128xf32>
    %25 = vector.shape_cast %24 : vector<128xf32> to vector<128x1xf32>
    %cst_19 = arith.constant dense<0x7F800000> : vector<128xf32>
    %26 = vector.multi_reduction <minimumf>, %20, %cst_19 [1] : vector<128x16xf32> to vector<128xf32>
    %27 = vector.shape_cast %26 : vector<128xf32> to vector<128x1xf32>
    %28 = vector.broadcast %27 : vector<128x1xf32> to vector<128x16xf32>
    %29 = arith.subf %20, %28 : vector<128x16xf32>
    %30 = arith.subf %25, %27 : vector<128x1xf32>
    %cst_20 = arith.constant 9.99999993E-9 : f32
    %31 = vector.broadcast %cst_20 : f32 to vector<128x1xf32>
    %32 = arith.addf %30, %31 : vector<128x1xf32>
    %33 = vector.broadcast %32 : vector<128x1xf32> to vector<128x16xf32>
    %34 = arith.divf %29, %33 : vector<128x16xf32>
    %cst_21 = arith.constant 0.000000e+00 : f32
    %35 = vector.broadcast %cst_21 : f32 to vector<128x16xf32>
    %36 = arith.cmpf ogt, %34, %35 : vector<128x16xf32>
    %37 = math.log %34 : vector<128x16xf32>
    %cst_22 = arith.constant 0xFF800000 : f32
    %38 = vector.broadcast %cst_22 : f32 to vector<128x16xf32>
    %39 = arith.select %36, %37, %38 : vector<128x16xi1>, vector<128x16xf32>
    %c0_23 = arith.constant 0 : index
    %c0_24 = arith.constant 0 : index
    %c0_25 = arith.constant 0 : index
    %40 = vector.load %arg6[%c0_23, %c0_24, %c0_25] : memref<1x128x16xf32, #tpu.memory_space<vmem>>, vector<1x128x16xf32>
    %41 = vector.shape_cast %40 : vector<1x128x16xf32> to vector<128x16xf32>
    %42 = arith.addf %39, %41 : vector<128x16xf32>
    %cst_26 = arith.constant dense<0xFF800000> : vector<128xf32>
    %43 = vector.multi_reduction <maximumf>, %42, %cst_26 [1] : vector<128x16xf32> to vector<128xf32>
    %44 = vector.shape_cast %43 : vector<128xf32> to vector<128x1xf32>
    %45 = tpu.iota {dimensions = array<i32: 1>} : vector<128x16xi32>
    %46 = arith.sitofp %45 : vector<128x16xi32> to vector<128x16xf32>
    %47 = vector.broadcast %44 : vector<128x1xf32> to vector<128x16xf32>
    %48 = arith.cmpf oge, %42, %47 : vector<128x16xf32>
    %cst_27 = arith.constant 1.600000e+01 : f32
    %49 = vector.broadcast %cst_27 : f32 to vector<128x16xf32>
    %50 = arith.select %48, %46, %49 : vector<128x16xi1>, vector<128x16xf32>
    %cst_28 = arith.constant dense<0x7F800000> : vector<128xf32>
    %51 = vector.multi_reduction <minimumf>, %50, %cst_28 [1] : vector<128x16xf32> to vector<128xf32>
    %52 = vector.shape_cast %51 : vector<128xf32> to vector<128x1xf32>
    %53 = arith.fptosi %52 : vector<128x1xf32> to vector<128x1xi32>
    %c0_29 = arith.constant 0 : index
    %c0_30 = arith.constant 0 : index
    %c0_31 = arith.constant 0 : index
    %54 = vector.load %arg9[%c0_29, %c0_30, %c0_31] : memref<1x128x1xi32, #tpu.memory_space<vmem>>, vector<1x128x1xi32>
    %55 = vector.shape_cast %54 : vector<1x128x1xi32> to vector<128x1xi32>
    %56 = vector.shape_cast %53 : vector<128x1xi32> to vector<1x128x1xi32>
    tpu.vector_store %arg9[%c0_29, %c0_30, %c0_31], %56 {strides = array<i32>} : memref<1x128x1xi32, #tpu.memory_space<vmem>>, vector<1x128x1xi32>,
    return
  }
  func.func @transform_0(%arg0: i32) -> (i32, i32, i32) {
    %c0_i32 = arith.constant 0 : i32
    %c0_i32_0 = arith.constant 0 : i32
    %c0_i32_1 = arith.constant 0 : i32
    return %arg0, %c0_i32, %c0_i32_0 : i32, i32, i32
  }
  func.func @transform_1(%arg0: i32) -> (i32, i32) {
    %c0_i32 = arith.constant 0 : i32
    %c0_i32_0 = arith.constant 0 : i32
    %c0_i32_1 = arith.constant 0 : i32
    return %c0_i32, %c0_i32_0 : i32, i32
  }
  func.func @transform_2(%arg0: i32) -> (i32, i32) {
    %c0_i32 = arith.constant 0 : i32
    %c0_i32_0 = arith.constant 0 : i32
    %c0_i32_1 = arith.constant 0 : i32
    return %c0_i32, %c0_i32_0 : i32, i32
  }
  func.func @transform_3(%arg0: i32) -> (i32, i32) {
    %c0_i32 = arith.constant 0 : i32
    %c0_i32_0 = arith.constant 0 : i32
    %c0_i32_1 = arith.constant 0 : i32
    return %c0_i32, %c0_i32_0 : i32, i32
  }
  func.func @transform_4(%arg0: i32) -> (i32, i32) {
    %c0_i32 = arith.constant 0 : i32
    %c0_i32_0 = arith.constant 0 : i32
    %c0_i32_1 = arith.constant 0 : i32
    return %c0_i32, %c0_i32_0 : i32, i32
  }
  func.func @transform_5(%arg0: i32) -> (i32, i32, i32) {
    %c0_i32 = arith.constant 0 : i32
    %c0_i32_0 = arith.constant 0 : i32
    %c0_i32_1 = arith.constant 0 : i32
    return %arg0, %c0_i32, %c0_i32_0 : i32, i32, i32
  }
  func.func @transform_6(%arg0: i32) -> (i32, i32, i32) {
    %c0_i32 = arith.constant 0 : i32
    %c0_i32_0 = arith.constant 0 : i32
    %c0_i32_1 = arith.constant 0 : i32
    return %arg0, %c0_i32, %c0_i32_0 : i32, i32, i32
  }
  func.func @transform_7(%arg0: i32) -> (i32, i32, i32) {
    %c0_i32 = arith.constant 0 : i32
    %c0_i32_0 = arith.constant 0 : i32
    %c0_i32_1 = arith.constant 0 : i32
    return %arg0, %c0_i32, %c0_i32_0 : i32, i32, i32
  }
  func.func @transform_8(%arg0: i32) -> (i32, i32, i32) {
    %c0_i32 = arith.constant 0 : i32
    %c0_i32_0 = arith.constant 0 : i32
    %c0_i32_1 = arith.constant 0 : i32
    return %arg0, %c0_i32, %c0_i32_0 : i32, i32, i32
  }
}

</mosaic_0001>

<llo_original>
// kernel: tpu_custom_call.1
$region0: #{tpu_custom_call.1}
  #allocation0 [shape = 'u32[]', space=smem, size = 0x4, offset = 0x4, fixed_abs, tag = 'smem constant byte address 0x4 - core index']
  #allocation1 [shape = 'u32[144,128]{1,0:T(1,128)}', space=vmem, size = 0x12000, scoped, tag = 'internal scratch']
  %s0 = inlined_call_operand.vmem [shape: f32[2,32,128], index: 0, kind: input, shape index: {}]
  %s1 = inlined_call_operand.vmem [shape: f32[32,32], index: 1, kind: input, shape index: {}]
  %s2 = inlined_call_operand.vmem [shape: f32[32,1], index: 2, kind: input, shape index: {}]
  %s3 = inlined_call_operand.vmem [shape: f32[32,16], index: 3, kind: input, shape index: {}]
  %s4 = inlined_call_operand.vmem [shape: f32[1,16], index: 4, kind: input, shape index: {}]
  %s5 = inlined_call_operand.vmem [shape: f32[2,128,16], index: 5, kind: input, shape index: {}]
  %s6 = inlined_call_operand.hbm [shape: f32[2,32,128], index: 6, kind: output, shape index: {0}]
  %s7 = inlined_call_operand.vmem [shape: f32[2,128,16], index: 7, kind: output, shape index: {1}]
  %s8 = inlined_call_operand.vmem [shape: s32[2,128,1], index: 8, kind: output, shape index: {2}]
  %9 = xla_tuple %s6, %s7, %s8
  %s10 = sld [smem:[#allocation0]]
  $region73: #{tpu_custom_call.1} parent=0
    _
  %s12 = ssub.s32 1, %s10
  %s13 = scalar_select 0, %s12, %s10
  $region1: #{tpu_custom_call.1} parent=0
    #allocation2 [shape = 'u8[32768]{0}', space=vmem, size = 0x8000, scoped, tag = 'output window, operand 0']
    #allocation3 [shape = 's32[2]{0}', space=sflag, size = 0x8, scoped, tag = 'scoped memory for tpu_custom_call.1']
    %14 = vsyncpa [#allocation3], 0
    %s15 = scalar_lea.sflag [#allocation3], 1
    %16 = vsyncpa %s15, 0
    loop: start=0, step=1, limit=4
    $region2: #{tpu_custom_call.1} parent=1 // loop_pre_header
      _
    $region3: #{tpu_custom_call.1} parent=1 // loop_header
      %s18 = sphi 0, %s22
      %p19 = scmp.ge.s32.totalorder %s18, 4
      %s28 = sphi 0, %s30
      %s31 = sphi 0, %s28
      %s32 = sphi 0, %s31
      %s48 = sphi 0, %s32
      %s52 = sphi 0, %s52
      %s54 = sphi 0, %s52
      %s55 = sphi 0, %s54
      %s69 = sphi 0, %s55
      %s73 = sphi 0, %s73
      %s75 = sphi 0, %s73
      %s76 = sphi 0, %s75
      %s90 = sphi 0, %s76
      %s94 = sphi 0, %s94
      %s96 = sphi 0, %s94
      %s97 = sphi 0, %s96
      %s111 = sphi 0, %s97
      %s115 = sphi 0, %s115
      %s117 = sphi 0, %s115
      %s118 = sphi 0, %s117
      %s132 = sphi 0, %s118
      %s138 = sphi 0, %s140
      %s141 = sphi 0, %s138
      %s142 = sphi 0, %s141
      %s158 = sphi 0, %s142
      %s164 = sphi 0, %s166
      %s167 = sphi 0, %s164
      %s168 = sphi 0, %s167
      %s184 = sphi 0, %s168
      %s190 = sphi 0, %s192
      %s193 = sphi 0, %s190
      %s194 = sphi 0, %s193
      %s210 = sphi 0, %s194
      %s216 = sphi 0, %s218
      %s219 = sphi 0, %s216
      %s220 = sphi 0, %s219
      %s236 = sphi 0, %s220
    $region4: #{tpu_custom_call.1} parent=1 // loop_header_branch
      %21 = sbr.rel (%p19) target = $region8
    $region5: #{tpu_custom_call.1} parent=1 // loop_body
      %s23 = ssub.s32 %s18, 1
      %s24 = ssub.s32 %s18, 2
      %s25 = sadd.s32 %s18, 1
      %s26 = ssub.s32 %s18, %s25
      %p27 = scmp.eq.s32.totalorder %s26, 0
      %s29 = sadd.s32 %s28, 1
      %s30 = scalar_select %p27, %s28, %s29
      %p33 = pneg %p27
      %p34 = scmp.eq.s32.totalorder %s18, 1
      %p35 = por %p33, %p34
      %p36 = scmp.ne.s32.totalorder %s28, %s31
      %p37 = scmp.eq.s32.totalorder %s18, 0
      %p38 = por %p36, %p37
      %p39 = scmp.ne.s32.totalorder %s28, %s31
      %p40 = scmp.eq.s32.totalorder %s23, 1
      %p41 = por %p39, %p40
      %p42 = scmp.ne.s32.totalorder %s31, %s32
      %p43 = scmp.eq.s32.totalorder %s23, 0
      %p44 = por %p42, %p43
      %p45 = scmp.ne.s32.totalorder %s31, %s32
      %p46 = scmp.eq.s32.totalorder %s24, 1
      %p47 = por %p45, %p46
      %p49 = scmp.ne.s32.totalorder %s32, %s48
      %p50 = scmp.eq.s32.totalorder %s24, 0
      %p51 = por %p49, %p50
      %s53 = sadd.s32 %s52, 1
      %p56 = scmp.eq.s32.totalorder %s18, 1
      %p57 = scmp.ne.s32.totalorder %s52, %s54
      %p58 = scmp.eq.s32.totalorder %s18, 0
      %p59 = por %p57, %p58
      %p60 = scmp.ne.s32.totalorder %s52, %s54
      %p61 = scmp.eq.s32.totalorder %s23, 1
      %p62 = por %p60, %p61
      %p63 = scmp.ne.s32.totalorder %s54, %s55
      %p64 = scmp.eq.s32.totalorder %s23, 0
      %p65 = por %p63, %p64
      %p66 = scmp.ne.s32.totalorder %s54, %s55
      %p67 = scmp.eq.s32.totalorder %s24, 1
      %p68 = por %p66, %p67
      %p70 = scmp.ne.s32.totalorder %s55, %s69
      %p71 = scmp.eq.s32.totalorder %s24, 0
      %p72 = por %p70, %p71
      %s74 = sadd.s32 %s73, 1
      %p77 = scmp.eq.s32.totalorder %s18, 1
      %p78 = scmp.ne.s32.totalorder %s73, %s75
      %p79 = scmp.eq.s32.totalorder %s18, 0
      %p80 = por %p78, %p79
      %p81 = scmp.ne.s32.totalorder %s73, %s75
      %p82 = scmp.eq.s32.totalorder %s23, 1
      %p83 = por %p81, %p82
      %p84 = scmp.ne.s32.totalorder %s75, %s76
      %p85 = scmp.eq.s32.totalorder %s23, 0
      %p86 = por %p84, %p85
      %p87 = scmp.ne.s32.totalorder %s75, %s76
      %p88 = scmp.eq.s32.totalorder %s24, 1
      %p89 = por %p87, %p88
      %p91 = scmp.ne.s32.totalorder %s76, %s90
      %p92 = scmp.eq.s32.totalorder %s24, 0
      %p93 = por %p91, %p92
      %s95 = sadd.s32 %s94, 1
      %p98 = scmp.eq.s32.totalorder %s18, 1
      %p99 = scmp.ne.s32.totalorder %s94, %s96
      %p100 = scmp.eq.s32.totalorder %s18, 0
      %p101 = por %p99, %p100
      %p102 = scmp.ne.s32.totalorder %s94, %s96
      %p103 = scmp.eq.s32.totalorder %s23, 1
      %p104 = por %p102, %p103
      %p105 = scmp.ne.s32.totalorder %s96, %s97
      %p106 = scmp.eq.s32.totalorder %s23, 0
      %p107 = por %p105, %p106
      %p108 = scmp.ne.s32.totalorder %s96, %s97
      %p109 = scmp.eq.s32.totalorder %s24, 1
      %p110 = por %p108, %p109
      %p112 = scmp.ne.s32.totalorder %s97, %s111
      %p113 = scmp.eq.s32.totalorder %s24, 0
      %p114 = por %p112, %p113
      %s116 = sadd.s32 %s115, 1
      %p119 = scmp.eq.s32.totalorder %s18, 1
      %p120 = scmp.ne.s32.totalorder %s115, %s117
      %p121 = scmp.eq.s32.totalorder %s18, 0
      %p122 = por %p120, %p121
      %p123 = scmp.ne.s32.totalorder %s115, %s117
      %p124 = scmp.eq.s32.totalorder %s23, 1
      %p125 = por %p123, %p124
      %p126 = scmp.ne.s32.totalorder %s117, %s118
      %p127 = scmp.eq.s32.totalorder %s23, 0
      %p128 = por %p126, %p127
      %p129 = scmp.ne.s32.totalorder %s117, %s118
      %p130 = scmp.eq.s32.totalorder %s24, 1
      %p131 = por %p129, %p130
      %p133 = scmp.ne.s32.totalorder %s118, %s132
      %p134 = scmp.eq.s32.totalorder %s24, 0
      %p135 = por %p133, %p134
      %s136 = ssub.s32 %s18, %s25
      %p137 = scmp.eq.s32.totalorder %s136, 0
      %s139 = sadd.s32 %s138, 1
      %s140 = scalar_select %p137, %s138, %s139
      %p143 = pneg %p137
      %p144 = scmp.eq.s32.totalorder %s18, 1
      %p145 = por %p143, %p144
      %p146 = scmp.ne.s32.totalorder %s138, %s141
      %p147 = scmp.eq.s32.totalorder %s18, 0
      %p148 = por %p146, %p147
      %p149 = scmp.ne.s32.totalorder %s138, %s141
      %p150 = scmp.eq.s32.totalorder %s23, 1
      %p151 = por %p149, %p150
      %p152 = scmp.ne.s32.totalorder %s141, %s142
      %p153 = scmp.eq.s32.totalorder %s23, 0
      %p154 = por %p152, %p153
      %p155 = scmp.ne.s32.totalorder %s141, %s142
      %p156 = scmp.eq.s32.totalorder %s24, 1
      %p157 = por %p155, %p156
      %p159 = scmp.ne.s32.totalorder %s142, %s158
      %p160 = scmp.eq.s32.totalorder %s24, 0
      %p161 = por %p159, %p160
      %s162 = ssub.s32 %s18, %s25
      %p163 = scmp.eq.s32.totalorder %s162, 0
      %s165 = sadd.s32 %s164, 1
      %s166 = scalar_select %p163, %s164, %s165
      %p169 = pneg %p163
      %p170 = scmp.eq.s32.totalorder %s18, 1
      %p171 = por %p169, %p170
      %p172 = scmp.ne.s32.totalorder %s164, %s167
      %p173 = scmp.eq.s32.totalorder %s18, 0
      %p174 = por %p172, %p173
      %p175 = scmp.ne.s32.totalorder %s164, %s167
      %p176 = scmp.eq.s32.totalorder %s23, 1
      %p177 = por %p175, %p176
      %p178 = scmp.ne.s32.totalorder %s167, %s168
      %p179 = scmp.eq.s32.totalorder %s23, 0
      %p180 = por %p178, %p179
      %p181 = scmp.ne.s32.totalorder %s167, %s168
      %p182 = scmp.eq.s32.totalorder %s24, 1
      %p183 = por %p181, %p182
      %p185 = scmp.ne.s32.totalorder %s168, %s184
      %p186 = scmp.eq.s32.totalorder %s24, 0
      %p187 = por %p185, %p186
      %s188 = ssub.s32 %s18, %s25
      %p189 = scmp.eq.s32.totalorder %s188, 0
      %s191 = sadd.s32 %s190, 1
      %s192 = scalar_select %p189, %s190, %s191
      %p195 = pneg %p189
      %p196 = scmp.eq.s32.totalorder %s18, 1
      %p197 = por %p195, %p196
      %p198 = scmp.ne.s32.totalorder %s190, %s193
      %p199 = scmp.eq.s32.totalorder %s18, 0
      %p200 = por %p198, %p199
      %p201 = scmp.ne.s32.totalorder %s190, %s193
      %p202 = scmp.eq.s32.totalorder %s23, 1
      %p203 = por %p201, %p202
      %p204 = scmp.ne.s32.totalorder %s193, %s194
      %p205 = scmp.eq.s32.totalorder %s23, 0
      %p206 = por %p204, %p205
      %p207 = scmp.ne.s32.totalorder %s193, %s194
      %p208 = scmp.eq.s32.totalorder %s24, 1
      %p209 = por %p207, %p208
      %p211 = scmp.ne.s32.totalorder %s194, %s210
      %p212 = scmp.eq.s32.totalorder %s24, 0
      %p213 = por %p211, %p212
      %s214 = ssub.s32 %s18, %s25
      %p215 = scmp.eq.s32.totalorder %s214, 0
      %s217 = sadd.s32 %s216, 1
      %s218 = scalar_select %p215, %s216, %s217
      %p221 = pneg %p215
      %p222 = scmp.eq.s32.totalorder %s18, 1
      %p223 = por %p221, %p222
      %p224 = scmp.ne.s32.totalorder %s216, %s219
      %p225 = scmp.eq.s32.totalorder %s18, 0
      %p226 = por %p224, %p225
      %p227 = scmp.ne.s32.totalorder %s216, %s219
      %p228 = scmp.eq.s32.totalorder %s23, 1
      %p229 = por %p227, %p228
      %p230 = scmp.ne.s32.totalorder %s219, %s220
      %p231 = scmp.eq.s32.totalorder %s23, 0
      %p232 = por %p230, %p231
      %p233 = scmp.ne.s32.totalorder %s219, %s220
      %p234 = scmp.eq.s32.totalorder %s24, 1
      %p235 = por %p233, %p234
      %p237 = scmp.ne.s32.totalorder %s220, %s236
      %p238 = scmp.eq.s32.totalorder %s24, 0
      %p239 = por %p237, %p238
      %p240 = scmp.le.s32.totalorder 1, %s18
      %p241 = scmp.lt.s32.totalorder %s18, 3
      %p242 = pnand %p240, %p241
      %p243 = pneg %p242
      // Predicated region
      $region9: #{tpu_custom_call.1} parent=5 // pred_check
        _
      $region10: #{tpu_custom_call.1} parent=5 // pred_check_branch
        %245 = sbr.rel (%p242) target = $region12
      $region11: #{tpu_custom_call.1} parent=5 // pred_region
        %s246 = ssub.s32 %s18, 1
        // Predicated region
        $region13: #{tpu_custom_call.1} parent=11 // pred_check
          %p247 = pneg %p65
        $region14: #{tpu_custom_call.1} parent=11 // pred_check_branch
          %249 = sbr.rel (%p247) target = $region16
        $region15: #{tpu_custom_call.1} parent=11 // pred_region
          _
        $region16: #{tpu_custom_call.1} parent=11 // pred_fallthru
          _
        // Predicated region
        $region17: #{tpu_custom_call.1} parent=11 // pred_check
          %p250 = pneg %p86
        $region18: #{tpu_custom_call.1} parent=11 // pred_check_branch
          %252 = sbr.rel (%p250) target = $region20
        $region19: #{tpu_custom_call.1} parent=11 // pred_region
          _
        $region20: #{tpu_custom_call.1} parent=11 // pred_fallthru
          _
        // Predicated region
        $region21: #{tpu_custom_call.1} parent=11 // pred_check
          %p253 = pneg %p107
        $region22: #{tpu_custom_call.1} parent=11 // pred_check_branch
          %255 = sbr.rel (%p253) target = $region24
        $region23: #{tpu_custom_call.1} parent=11 // pred_region
          _
        $region24: #{tpu_custom_call.1} parent=11 // pred_fallthru
          _
        // Predicated region
        $region25: #{tpu_custom_call.1} parent=11 // pred_check
          %p256 = pneg %p128
        $region26: #{tpu_custom_call.1} parent=11 // pred_check_branch
          %258 = sbr.rel (%p256) target = $region28
        $region27: #{tpu_custom_call.1} parent=11 // pred_region
          _
        $region28: #{tpu_custom_call.1} parent=11 // pred_fallthru
          _
      $region12: #{tpu_custom_call.1} parent=5 // pred_fallthru
        _
      %p259 = scmp.lt.s32.totalorder %s18, 2
      // Predicated region
      $region29: #{tpu_custom_call.1} parent=5 // pred_check
        %p260 = pneg %p259
      $region30: #{tpu_custom_call.1} parent=5 // pred_check_branch
        %262 = sbr.rel (%p260) target = $region32
      $region31: #{tpu_custom_call.1} parent=5 // pred_region
        // Predicated region
        $region33: #{tpu_custom_call.1} parent=31 // pred_check
          %p263 = pneg %p38
        $region34: #{tpu_custom_call.1} parent=31 // pred_check_branch
          %265 = sbr.rel (%p263) target = $region36
        $region35: #{tpu_custom_call.1} parent=31 // pred_region
          %p266 = scmp.lt.s32.totalorder %s18, 1
          %s267 = scalar_select %p266, %s18, 1
          %s268 = smul.addr %s267, 4
          %s269 = smul.addr %s268, 8
          %s270 = scalar_lea.vmem %s0, %s269
        $region36: #{tpu_custom_call.1} parent=31 // pred_fallthru
          _
        // Predicated region
        $region37: #{tpu_custom_call.1} parent=31 // pred_check
          %p271 = pneg %p148
        $region38: #{tpu_custom_call.1} parent=31 // pred_check_branch
          %273 = sbr.rel (%p271) target = $region40
        $region39: #{tpu_custom_call.1} parent=31 // pred_region
          %p274 = scmp.lt.s32.totalorder %s18, 1
          %s275 = scalar_select %p274, %s18, 1
          %s276 = smul.addr %s275, 16
          %s277 = smul.addr %s276, 8
          %s278 = scalar_lea.vmem %s5, %s277
        $region40: #{tpu_custom_call.1} parent=31 // pred_fallthru
          _
      $region32: #{tpu_custom_call.1} parent=5 // pred_fallthru
        _
      %p279 = scmp.le.s32.totalorder 1, %s18
      %p280 = scmp.lt.s32.totalorder %s18, 3
      %p281 = pnand %p279, %p280
      %p282 = pneg %p281
      // Predicated region
      $region41: #{tpu_custom_call.1} parent=5 // pred_check
        _
      $region42: #{tpu_custom_call.1} parent=5 // pred_check_branch
        %284 = sbr.rel (%p281) target = $region44
      $region43: #{tpu_custom_call.1} parent=5 // pred_region
        %s285 = ssub.s32 %s18, 1
        %p286 = scmp.lt.s32.totalorder %s23, 1
        %s287 = scalar_select %p286, %s23, 1
        %s288 = smul.addr %s287, 4
        %s289 = smul.addr %s288, 8
        %s290 = scalar_lea.vmem %s0, %s289
        %p291 = pneg %p44
        %p292 = pneg %p41
        %p293 = pneg %p65
        %p294 = pneg %p62
        %p295 = pneg %p86
        %p296 = pneg %p83
        %p297 = pneg %p107
        %p298 = pneg %p104
        %p299 = pneg %p128
        %p300 = pneg %p125
        %p301 = scmp.lt.s32.totalorder %s23, 1
        %s302 = scalar_select %p301, %s23, 1
        %s303 = smul.addr %s302, 16
        %s304 = smul.addr %s303, 8
        %s305 = scalar_lea.vmem %s5, %s304
        %p306 = pneg %p154
        %p307 = pneg %p151
        %p308 = pneg %p180
        %p309 = pneg %p177
        %s310 = sand.u32 %s167, 1
        %s311 = scalar_lea.sflag [#allocation3], %s310
        %s312 = sand.u32 %s167, 1
        %s313 = smul.addr %s312, 32
        %s314 = scalar_lea.vmem [#allocation2], %s313
        %p315 = pneg %p206
        %p316 = pneg %p203
        %p317 = scmp.lt.s32.totalorder %s23, 1
        %s318 = scalar_select %p317, %s23, 1
        %s319 = smul.addr %s318, 16
        %s320 = smul.addr %s319, 8
        %s321 = scalar_lea.vmem %s7, %s320
        %p322 = pneg %p232
        %p323 = pneg %p229
        %p324 = scmp.lt.s32.totalorder %s23, 1
        %s325 = scalar_select %p324, %s23, 1
        %s326 = smul.addr %s325, 16
        %s327 = smul.addr %s326, 8
        %s328 = scalar_lea.vmem %s8, %s327
        %p329 = scmp.lt.s32.totalorder %s23, 1
        %s330 = scalar_select %p329, %s23, 1
        %s331 = smul.addr %s330, 4
        %s332 = smul.addr %s331, 8
        %s333 = scalar_lea.vmem %s0, %s332
        %p334 = scmp.lt.s32.totalorder %s23, 1
        %s335 = scalar_select %p334, %s23, 1
        %s336 = smul.addr %s335, 16
        %s337 = smul.addr %s336, 8
        %s338 = scalar_lea.vmem %s5, %s337
        %p339 = scmp.lt.s32.totalorder %s23, 1
        %s340 = scalar_select %p339, %s23, 1
        %s341 = smul.addr %s340, 16
        %s342 = smul.addr %s341, 8
        %s343 = scalar_lea.vmem %s7, %s342
        %p344 = scmp.lt.s32.totalorder %s23, 1
        %s345 = scalar_select %p344, %s23, 1
        %s346 = smul.addr %s345, 16
        %s347 = smul.addr %s346, 8
        %s348 = scalar_lea.vmem %s8, %s347
        %v350 = vld [vmem:[%s333] sm:$0xff]
        %v351 = vld [vmem:[%s333 + $0x8] sm:$0xff]
        %v352 = vld [vmem:[%s333 + $0x10] sm:$0xff]
        %v353 = vld [vmem:[%s333 + $0x18] sm:$0xff]
        %v354 = vld [vmem:[%s1] sm:$0xff]
        %v355 = vld [vmem:[%s1 + $0x8] sm:$0xff]
        %v356 = vld [vmem:[%s1 + $0x10] sm:$0xff]
        %v357 = vld [vmem:[%s1 + $0x18] sm:$0xff]
        %v358 = vpack.c.bf16 %v355, %v354
        %v359 = vpack.c.bf16 %v357, %v356
        %v360 = vpack.c.bf16 %v351, %v350
        %v361 = vpack.c.bf16 %v353, %v352
        %v362 = vld [vmem:[%s2] sm:$0xff]
        %v363 = vld [vmem:[%s2 + $0x8] sm:$0xff]
        %v364 = vld [vmem:[%s2 + $0x10] sm:$0xff]
        %v365 = vld [vmem:[%s2 + $0x18] sm:$0xff]
        %367 = vset.pattern.permute.xlu0 0
        %368 = vperm.xlu0 %367, %v362
        %v369 = vpop.permute.xlu0 %368
        %372 = vset.pattern.permute.xlu0 0
        %373 = vperm.xlu0 %372, %v363
        %v374 = vpop.permute.xlu0 %373
        %377 = vset.pattern.permute.xlu0 0
        %378 = vperm.xlu0 %377, %v364
        %v379 = vpop.permute.xlu0 %378
        %382 = vset.pattern.permute.xlu0 0
        %383 = vperm.xlu0 %382, %v365
        %v384 = vpop.permute.xlu0 %383
        %vm386 = vcmask 261120
        %v388 = vsel %vm386, %v358, 0
        %v391 = vsel %vm386, %v359, 0
        %393 = vmatprep.subr.bf16.mxu0 0
        %394 = vmatpush1.bf16.msra.mxu0 %v360
        %395 = vmatprep.subr.bf16.mxu0 0
        %396 = vmatpush1.bf16.msra.mxu0 %v361
        %397 = vmatprep.subr.bf16.mxu0 0
        %398 = vmatpush1.bf16.msra.mxu0 0
        %399 = vmatprep.subr.bf16.mxu0 0
        %400 = vmatpush1.bf16.msra.mxu0 0
        %401 = vmatprep.subr.bf16.mxu0 0
        %402 = vmatpush1.bf16.msra.mxu0 0
        %403 = vmatprep.subr.bf16.mxu0 0
        %404 = vmatpush1.bf16.msra.mxu0 0
        %405 = vmatprep.subr.bf16.mxu0 0
        %406 = vmatpush1.bf16.msra.mxu0 0
        %407 = vmatprep.subr.bf16.mxu0 0
        %408 = vmatpush1.bf16.msra.mxu0 0
        %409 = vmatprep.subr.bf16.mxu0 0
        %410 = vmatpush1.bf16.msra.mxu0 0
        %411 = vmatprep.subr.bf16.mxu0 0
        %412 = vmatpush1.bf16.msra.mxu0 0
        %413 = vmatprep.subr.bf16.mxu0 0
        %414 = vmatpush1.bf16.msra.mxu0 0
        %415 = vmatprep.subr.bf16.mxu0 0
        %416 = vmatpush1.bf16.msra.mxu0 0
        %417 = vmatprep.subr.bf16.mxu0 0
        %418 = vmatpush1.bf16.msra.mxu0 0
        %419 = vmatprep.subr.bf16.mxu0 0
        %420 = vmatpush1.bf16.msra.mxu0 0
        %421 = vmatprep.subr.bf16.mxu0 0
        %422 = vmatpush1.bf16.msra.mxu0 0
        %423 = vmatprep.subr.bf16.mxu0 0
        %424 = vmatpush1.bf16.msra.mxu0 0
        %425 = vmatprep.mubr.bf16.mxu0 0
        %426 = vmatmul.mubr.bf16.gmra.mrb[0].mxu0 %v388
        %v427 = vpop.f32.mrb[0].mxu0
        %v428 = vadd.f32 %v369, %v427
        %v429 = vpop.f32.mrb[0].mxu0
        %v430 = vpop.f32.mrb[0].mxu0
        %v431 = vadd.f32 %v374, %v430
        %v432 = vpop.f32.mrb[0].mxu0
        %433 = vmatprep.mubr.bf16.mxu0 0
        %434 = vmatmul.mubr.bf16.gmra.mrb[0].mxu0 %v391
        %v435 = vpop.f32.mrb[0].mxu0
        %v436 = vadd.f32 %v379, %v435
        %v437 = vpop.f32.mrb[0].mxu0
        %v438 = vpop.f32.mrb[0].mxu0
        %v439 = vadd.f32 %v384, %v438
        %v440 = vpop.f32.mrb[0].mxu0
        %441 = vdwg.mxu0
        %v442 = vmax.f32 %v428, 0.0
        %v443 = vmax.f32 %v431, 0.0
        %v444 = vmax.f32 %v436, 0.0
        %v445 = vmax.f32 %v439, 0.0
        %446 = vst [vmem:[%s314] sm:$0xff] %v442
        %447 = vst [vmem:[%s314 + $0x8] sm:$0xff] %v443
        %448 = vst [vmem:[%s314 + $0x10] sm:$0xff] %v444
        %449 = vst [vmem:[%s314 + $0x18] sm:$0xff] %v445
        %v450 = vpack.c.bf16 %v443, %v442
        %v451 = vpack.c.bf16 %v445, %v444
        %v452 = vld [vmem:[%s3] sm:$0xff]
        %v453 = vld [vmem:[%s3 + $0x8] sm:$0xff]
        %v454 = vld [vmem:[%s3 + $0x10] sm:$0xff]
        %v455 = vld [vmem:[%s3 + $0x18] sm:$0xff]
        %v456 = vpack.c.bf16 %v453, %v452
        %v457 = vpack.c.bf16 %v455, %v454
        %v458 = vld [vmem:[%s4] sm:$0x1]
        %v460 = vlaneseq
        %v461 = vshrl.u32 %v460, 7
        %v462 = vsub.s32 0, %v461
        %v463 = vrot.slane %v458, %v462
        %465 = vxpose.xlu0.c.b16.start [1/8] %v450, 128
        %466 = vxpose.xlu0.c.b16.cont [2/8] %v451, 128
        %467 = vxpose.xlu0.c.b16.cont [3/8] 0, 128
        %468 = vxpose.xlu0.c.b16.cont [4/8] 0, 128
        %469 = vxpose.xlu0.c.b16.cont [5/8] 0, 128
        %470 = vxpose.xlu0.c.b16.cont [6/8] 0, 128
        %471 = vxpose.xlu0.c.b16.cont [7/8] 0, 128
        %472 = vxpose.xlu0.c.b16.end [8/8] 0, 128
        %v473 = vpop.trf.xlu0
        %v474 = vpop.trf.xlu0
        %v475 = vpop.trf.xlu0
        %v476 = vpop.trf.xlu0
        %v477 = vpop.trf.xlu0
        %v478 = vpop.trf.xlu0
        %v479 = vpop.trf.xlu0
        %v480 = vpop.trf.xlu0
        %v482 = vsel %vm386, %v473, 0
        %v485 = vsel %vm386, %v474, 0
        %v488 = vsel %vm386, %v475, 0
        %v491 = vsel %vm386, %v476, 0
        %v494 = vsel %vm386, %v477, 0
        %v497 = vsel %vm386, %v478, 0
        %v500 = vsel %vm386, %v479, 0
        %v503 = vsel %vm386, %v480, 0
        %505 = vmatprep.subr.bf16.mxu0 0
        %506 = vmatpush1.bf16.msra.mxu0 %v456
        %507 = vmatprep.subr.bf16.mxu0 0
        %508 = vmatpush1.bf16.msra.mxu0 %v457
        %509 = vmatprep.subr.bf16.mxu0 0
        %510 = vmatpush1.bf16.msra.mxu0 0
        %511 = vmatprep.subr.bf16.mxu0 0
        %512 = vmatpush1.bf16.msra.mxu0 0
        %513 = vmatprep.subr.bf16.mxu0 0
        %514 = vmatpush1.bf16.msra.mxu0 0
        %515 = vmatprep.subr.bf16.mxu0 0
        %516 = vmatpush1.bf16.msra.mxu0 0
        %517 = vmatprep.subr.bf16.mxu0 0
        %518 = vmatpush1.bf16.msra.mxu0 0
        %519 = vmatprep.subr.bf16.mxu0 0
        %520 = vmatpush1.bf16.msra.mxu0 0
        %521 = vmatprep.subr.bf16.mxu0 0
        %522 = vmatpush1.bf16.msra.mxu0 0
        %523 = vmatprep.subr.bf16.mxu0 0
        %524 = vmatpush1.bf16.msra.mxu0 0
        %525 = vmatprep.subr.bf16.mxu0 0
        %526 = vmatpush1.bf16.msra.mxu0 0
        %527 = vmatprep.subr.bf16.mxu0 0
        %528 = vmatpush1.bf16.msra.mxu0 0
        %529 = vmatprep.subr.bf16.mxu0 0
        %530 = vmatpush1.bf16.msra.mxu0 0
        %531 = vmatprep.subr.bf16.mxu0 0
        %532 = vmatpush1.bf16.msra.mxu0 0
        %533 = vmatprep.subr.bf16.mxu0 0
        %534 = vmatpush1.bf16.msra.mxu0 0
        %535 = vmatprep.subr.bf16.mxu0 0
        %536 = vmatpush1.bf16.msra.mxu0 0
        %537 = vmatprep.mubr.bf16.mxu0 0
        %538 = vmatmul.mubr.bf16.gmra.mrb[0].mxu0 %v482
        %v539 = vpop.f32.mrb[0].mxu0
        %v540 = vadd.f32 %v463, %v539
        %v541 = vpop.f32.mrb[0].mxu0
        %v542 = vpop.f32.mrb[0].mxu0
        %v543 = vadd.f32 %v463, %v542
        %v544 = vpop.f32.mrb[0].mxu0
        %545 = vmatprep.mubr.bf16.mxu0 0
        %546 = vmatmul.mubr.bf16.gmra.mrb[0].mxu0 %v485
        %v547 = vpop.f32.mrb[0].mxu0
        %v548 = vadd.f32 %v463, %v547
        %v549 = vpop.f32.mrb[0].mxu0
        %v550 = vpop.f32.mrb[0].mxu0
        %v551 = vadd.f32 %v463, %v550
        %v552 = vpop.f32.mrb[0].mxu0
        %553 = vmatprep.mubr.bf16.mxu0 0
        %554 = vmatmul.mubr.bf16.gmra.mrb[0].mxu0 %v488
        %v555 = vpop.f32.mrb[0].mxu0
        %v556 = vadd.f32 %v463, %v555
        %v557 = vpop.f32.mrb[0].mxu0
        %v558 = vpop.f32.mrb[0].mxu0
        %v559 = vadd.f32 %v463, %v558
        %v560 = vpop.f32.mrb[0].mxu0
        %561 = vmatprep.mubr.bf16.mxu0 0
        %562 = vmatmul.mubr.bf16.gmra.mrb[0].mxu0 %v491
        %v563 = vpop.f32.mrb[0].mxu0
        %v564 = vadd.f32 %v463, %v563
        %v565 = vpop.f32.mrb[0].mxu0
        %v566 = vpop.f32.mrb[0].mxu0
        %v567 = vadd.f32 %v463, %v566
        %v568 = vpop.f32.mrb[0].mxu0
        %569 = vmatprep.mubr.bf16.mxu0 0
        %570 = vmatmul.mubr.bf16.gmra.mrb[0].mxu0 %v494
        %v571 = vpop.f32.mrb[0].mxu0
        %v572 = vadd.f32 %v463, %v571
        %v573 = vpop.f32.mrb[0].mxu0
        %v574 = vpop.f32.mrb[0].mxu0
        %v575 = vadd.f32 %v463, %v574
        %v576 = vpop.f32.mrb[0].mxu0
        %577 = vmatprep.mubr.bf16.mxu0 0
        %578 = vmatmul.mubr.bf16.gmra.mrb[0].mxu0 %v497
        %v579 = vpop.f32.mrb[0].mxu0
        %v580 = vadd.f32 %v463, %v579
        %v581 = vpop.f32.mrb[0].mxu0
        %v582 = vpop.f32.mrb[0].mxu0
        %v583 = vadd.f32 %v463, %v582
        %v584 = vpop.f32.mrb[0].mxu0
        %585 = vmatprep.mubr.bf16.mxu0 0
        %586 = vmatmul.mubr.bf16.gmra.mrb[0].mxu0 %v500
        %v587 = vpop.f32.mrb[0].mxu0
        %v588 = vadd.f32 %v463, %v587
        %v589 = vpop.f32.mrb[0].mxu0
        %v590 = vpop.f32.mrb[0].mxu0
        %v591 = vadd.f32 %v463, %v590
        %v592 = vpop.f32.mrb[0].mxu0
        %593 = vmatprep.mubr.bf16.mxu0 0
        %594 = vmatmul.mubr.bf16.gmra.mrb[0].mxu0 %v503
        %v595 = vpop.f32.mrb[0].mxu0
        %v596 = vadd.f32 %v463, %v595
        %v597 = vpop.f32.mrb[0].mxu0
        %v598 = vpop.f32.mrb[0].mxu0
        %v599 = vadd.f32 %v463, %v598
        %v600 = vpop.f32.mrb[0].mxu0
        %601 = vdwg.mxu0
        %vm602 = vcmask 130048
        %603 = vst.msk [vmem:[%s343] sm:$0xff] %vm602, %v540
        %604 = vst.msk [vmem:[%s343 + $0x8] sm:$0xff] %vm602, %v543
        %605 = vst.msk [vmem:[%s343 + $0x10] sm:$0xff] %vm602, %v548
        %606 = vst.msk [vmem:[%s343 + $0x18] sm:$0xff] %vm602, %v551
        %607 = vst.msk [vmem:[%s343 + $0x20] sm:$0xff] %vm602, %v556
        %608 = vst.msk [vmem:[%s343 + $0x28] sm:$0xff] %vm602, %v559
        %609 = vst.msk [vmem:[%s343 + $0x30] sm:$0xff] %vm602, %v564
        %610 = vst.msk [vmem:[%s343 + $0x38] sm:$0xff] %vm602, %v567
        %611 = vst.msk [vmem:[%s343 + $0x40] sm:$0xff] %vm602, %v572
        %612 = vst.msk [vmem:[%s343 + $0x48] sm:$0xff] %vm602, %v575
        %613 = vst.msk [vmem:[%s343 + $0x50] sm:$0xff] %vm602, %v580
        %614 = vst.msk [vmem:[%s343 + $0x58] sm:$0xff] %vm602, %v583
        %615 = vst.msk [vmem:[%s343 + $0x60] sm:$0xff] %vm602, %v588
        %616 = vst.msk [vmem:[%s343 + $0x68] sm:$0xff] %vm602, %v591
        %617 = vst.msk [vmem:[%s343 + $0x70] sm:$0xff] %vm602, %v596
        %618 = vst.msk [vmem:[%s343 + $0x78] sm:$0xff] %vm602, %v599
        %v619 = vsel %vm602, %v540, -inf
        %620 = vmax.xlane.f32.xlu0 %v619
        %v621 = vpop.xlane.xlu0 %620
        %v622 = vsel %vm602, %v543, -inf
        %623 = vmax.xlane.f32.xlu0 %v622
        %v624 = vpop.xlane.xlu0 %623
        %v625 = vsel %vm602, %v548, -inf
        %626 = vmax.xlane.f32.xlu0 %v625
        %v627 = vpop.xlane.xlu0 %626
        %v628 = vsel %vm602, %v551, -inf
        %629 = vmax.xlane.f32.xlu0 %v628
        %v630 = vpop.xlane.xlu0 %629
        %v631 = vsel %vm602, %v556, -inf
        %632 = vmax.xlane.f32.xlu0 %v631
        %v633 = vpop.xlane.xlu0 %632
        %v634 = vsel %vm602, %v559, -inf
        %635 = vmax.xlane.f32.xlu0 %v634
        %v636 = vpop.xlane.xlu0 %635
        %v637 = vsel %vm602, %v564, -inf
        %638 = vmax.xlane.f32.xlu0 %v637
        %v639 = vpop.xlane.xlu0 %638
        %v640 = vsel %vm602, %v567, -inf
        %641 = vmax.xlane.f32.xlu0 %v640
        %v642 = vpop.xlane.xlu0 %641
        %v643 = vsel %vm602, %v572, -inf
        %644 = vmax.xlane.f32.xlu0 %v643
        %v645 = vpop.xlane.xlu0 %644
        %v646 = vsel %vm602, %v575, -inf
        %647 = vmax.xlane.f32.xlu0 %v646
        %v648 = vpop.xlane.xlu0 %647
        %v649 = vsel %vm602, %v580, -inf
        %650 = vmax.xlane.f32.xlu0 %v649
        %v651 = vpop.xlane.xlu0 %650
        %v652 = vsel %vm602, %v583, -inf
        %653 = vmax.xlane.f32.xlu0 %v652
        %v654 = vpop.xlane.xlu0 %653
        %v655 = vsel %vm602, %v588, -inf
        %656 = vmax.xlane.f32.xlu0 %v655
        %v657 = vpop.xlane.xlu0 %656
        %v658 = vsel %vm602, %v591, -inf
        %659 = vmax.xlane.f32.xlu0 %v658
        %v660 = vpop.xlane.xlu0 %659
        %v661 = vsel %vm602, %v596, -inf
        %662 = vmax.xlane.f32.xlu0 %v661
        %v663 = vpop.xlane.xlu0 %662
        %v664 = vsel %vm602, %v599, -inf
        %665 = vmax.xlane.f32.xlu0 %v664
        %v666 = vpop.xlane.xlu0 %665
        %v667 = vsel %vm602, %v540, inf
        %668 = vmin.xlane.f32.xlu0 %v667
        %v669 = vpop.xlane.xlu0 %668
        %v670 = vsel %vm602, %v543, inf
        %671 = vmin.xlane.f32.xlu0 %v670
        %v672 = vpop.xlane.xlu0 %671
        %v673 = vsel %vm602, %v548, inf
        %674 = vmin.xlane.f32.xlu0 %v673
        %v675 = vpop.xlane.xlu0 %674
        %v676 = vsel %vm602, %v551, inf
        %677 = vmin.xlane.f32.xlu0 %v676
        %v678 = vpop.xlane.xlu0 %677
        %v679 = vsel %vm602, %v556, inf
        %680 = vmin.xlane.f32.xlu0 %v679
        %v681 = vpop.xlane.xlu0 %680
        %v682 = vsel %vm602, %v559, inf
        %683 = vmin.xlane.f32.xlu0 %v682
        %v684 = vpop.xlane.xlu0 %683
        %v685 = vsel %vm602, %v564, inf
        %686 = vmin.xlane.f32.xlu0 %v685
        %v687 = vpop.xlane.xlu0 %686
        %v688 = vsel %vm602, %v567, inf
        %689 = vmin.xlane.f32.xlu0 %v688
        %v690 = vpop.xlane.xlu0 %689
        %v691 = vsel %vm602, %v572, inf
        %692 = vmin.xlane.f32.xlu0 %v691
        %v693 = vpop.xlane.xlu0 %692
        %v694 = vsel %vm602, %v575, inf
        %695 = vmin.xlane.f32.xlu0 %v694
        %v696 = vpop.xlane.xlu0 %695
        %v697 = vsel %vm602, %v580, inf
        %698 = vmin.xlane.f32.xlu0 %v697
        %v699 = vpop.xlane.xlu0 %698
        %v700 = vsel %vm602, %v583, inf
        %701 = vmin.xlane.f32.xlu0 %v700
        %v702 = vpop.xlane.xlu0 %701
        %v703 = vsel %vm602, %v588, inf
        %704 = vmin.xlane.f32.xlu0 %v703
        %v705 = vpop.xlane.xlu0 %704
        %v706 = vsel %vm602, %v591, inf
        %707 = vmin.xlane.f32.xlu0 %v706
        %v708 = vpop.xlane.xlu0 %707
        %v709 = vsel %vm602, %v596, inf
        %710 = vmin.xlane.f32.xlu0 %v709
        %v711 = vpop.xlane.xlu0 %710
        %v712 = vsel %vm602, %v599, inf
        %713 = vmin.xlane.f32.xlu0 %v712
        %v714 = vpop.xlane.xlu0 %713
        %v715 = vsub.f32 %v540, %v669
        %v716 = vsub.f32 %v543, %v672
        %v717 = vsub.f32 %v548, %v675
        %v718 = vsub.f32 %v551, %v678
        %v719 = vsub.f32 %v556, %v681
        %v720 = vsub.f32 %v559, %v684
        %v721 = vsub.f32 %v564, %v687
        %v722 = vsub.f32 %v567, %v690
        %v723 = vsub.f32 %v572, %v693
        %v724 = vsub.f32 %v575, %v696
        %v725 = vsub.f32 %v580, %v699
        %v726 = vsub.f32 %v583, %v702
        %v727 = vsub.f32 %v588, %v705
        %v728 = vsub.f32 %v591, %v708
        %v729 = vsub.f32 %v596, %v711
        %v730 = vsub.f32 %v599, %v714
        %v731 = vsub.f32 %v621, %v669
        %v732 = vsub.f32 %v624, %v672
        %v733 = vsub.f32 %v627, %v675
        %v734 = vsub.f32 %v630, %v678
        %v735 = vsub.f32 %v633, %v681
        %v736 = vsub.f32 %v636, %v684
        %v737 = vsub.f32 %v639, %v687
        %v738 = vsub.f32 %v642, %v690
        %v739 = vsub.f32 %v645, %v693
        %v740 = vsub.f32 %v648, %v696
        %v741 = vsub.f32 %v651, %v699
        %v742 = vsub.f32 %v654, %v702
        %v743 = vsub.f32 %v657, %v705
        %v744 = vsub.f32 %v660, %v708
        %v745 = vsub.f32 %v663, %v711
        %v746 = vsub.f32 %v666, %v714
        %v747 = vadd.f32 %v731, 1e-08
        %v748 = vadd.f32 %v732, 1e-08
        %v749 = vadd.f32 %v733, 1e-08
        %v750 = vadd.f32 %v734, 1e-08
        %v751 = vadd.f32 %v735, 1e-08
        %v752 = vadd.f32 %v736, 1e-08
        %v753 = vadd.f32 %v737, 1e-08
        %v754 = vadd.f32 %v738, 1e-08
        %v755 = vadd.f32 %v739, 1e-08
        %v756 = vadd.f32 %v740, 1e-08
        %v757 = vadd.f32 %v741, 1e-08
        %v758 = vadd.f32 %v742, 1e-08
        %v759 = vadd.f32 %v743, 1e-08
        %v760 = vadd.f32 %v744, 1e-08
        %v761 = vadd.f32 %v745, 1e-08
        %v762 = vadd.f32 %v746, 1e-08
        %v763 = vrcp.pop %v747
        %v764 = vmul.f32 %v715, %v763
        %v765 = vrcp.pop %v748
        %v766 = vmul.f32 %v716, %v765
        %v767 = vrcp.pop %v749
        %v768 = vmul.f32 %v717, %v767
        %v769 = vrcp.pop %v750
        %v770 = vmul.f32 %v718, %v769
        %v771 = vrcp.pop %v751
        %v772 = vmul.f32 %v719, %v771
        %v773 = vrcp.pop %v752
        %v774 = vmul.f32 %v720, %v773
        %v775 = vrcp.pop %v753
        %v776 = vmul.f32 %v721, %v775
        %v777 = vrcp.pop %v754
        %v778 = vmul.f32 %v722, %v777
        %v779 = vrcp.pop %v755
        %v780 = vmul.f32 %v723, %v779
        %v781 = vrcp.pop %v756
        %v782 = vmul.f32 %v724, %v781
        %v783 = vrcp.pop %v757
        %v784 = vmul.f32 %v725, %v783
        %v785 = vrcp.pop %v758
        %v786 = vmul.f32 %v726, %v785
        %v787 = vrcp.pop %v759
        %v788 = vmul.f32 %v727, %v787
        %v789 = vrcp.pop %v760
        %v790 = vmul.f32 %v728, %v789
        %v791 = vrcp.pop %v761
        %v792 = vmul.f32 %v729, %v791
        %v793 = vrcp.pop %v762
        %v794 = vmul.f32 %v730, %v793
        %vm795 = vcmp.gt.f32.partialorder %v764, 0.0
        %vm796 = vcmp.gt.f32.partialorder %v766, 0.0
        %vm797 = vcmp.gt.f32.partialorder %v768, 0.0
        %vm798 = vcmp.gt.f32.partialorder %v770, 0.0
        %vm799 = vcmp.gt.f32.partialorder %v772, 0.0
        %vm800 = vcmp.gt.f32.partialorder %v774, 0.0
        %vm801 = vcmp.gt.f32.partialorder %v776, 0.0
        %vm802 = vcmp.gt.f32.partialorder %v778, 0.0
        %vm803 = vcmp.gt.f32.partialorder %v780, 0.0
        %vm804 = vcmp.gt.f32.partialorder %v782, 0.0
        %vm805 = vcmp.gt.f32.partialorder %v784, 0.0
        %vm806 = vcmp.gt.f32.partialorder %v786, 0.0
        %vm807 = vcmp.gt.f32.partialorder %v788, 0.0
        %vm808 = vcmp.gt.f32.partialorder %v790, 0.0
        %vm809 = vcmp.gt.f32.partialorder %v792, 0.0
        %vm810 = vcmp.gt.f32.partialorder %v794, 0.0
        %v811 = vlog2.pop %v764
        %v812 = vmul.f32 %v811, 0.6931472
        %v813 = vlog2.pop %v766
        %v814 = vmul.f32 %v813, 0.6931472
        %v815 = vlog2.pop %v768
        %v816 = vmul.f32 %v815, 0.6931472
        %v817 = vlog2.pop %v770
        %v818 = vmul.f32 %v817, 0.6931472
        %v819 = vlog2.pop %v772
        %v820 = vmul.f32 %v819, 0.6931472
        %v821 = vlog2.pop %v774
        %v822 = vmul.f32 %v821, 0.6931472
        %v823 = vlog2.pop %v776
        %v824 = vmul.f32 %v823, 0.6931472
        %v825 = vlog2.pop %v778
        %v826 = vmul.f32 %v825, 0.6931472
        %v827 = vlog2.pop %v780
        %v828 = vmul.f32 %v827, 0.6931472
        %v829 = vlog2.pop %v782
        %v830 = vmul.f32 %v829, 0.6931472
        %v831 = vlog2.pop %v784
        %v832 = vmul.f32 %v831, 0.6931472
        %v833 = vlog2.pop %v786
        %v834 = vmul.f32 %v833, 0.6931472
        %v835 = vlog2.pop %v788
        %v836 = vmul.f32 %v835, 0.6931472
        %v837 = vlog2.pop %v790
        %v838 = vmul.f32 %v837, 0.6931472
        %v839 = vlog2.pop %v792
        %v840 = vmul.f32 %v839, 0.6931472
        %v841 = vlog2.pop %v794
        %v842 = vmul.f32 %v841, 0.6931472
        %v843 = vsel %vm795, %v812, -inf
        %v844 = vsel %vm796, %v814, -inf
        %v845 = vsel %vm797, %v816, -inf
        %v846 = vsel %vm798, %v818, -inf
        %v847 = vsel %vm799, %v820, -inf
        %v848 = vsel %vm800, %v822, -inf
        %v849 = vsel %vm801, %v824, -inf
        %v850 = vsel %vm802, %v826, -inf
        %v851 = vsel %vm803, %v828, -inf
        %v852 = vsel %vm804, %v830, -inf
        %v853 = vsel %vm805, %v832, -inf
        %v854 = vsel %vm806, %v834, -inf
        %v855 = vsel %vm807, %v836, -inf
        %v856 = vsel %vm808, %v838, -inf
        %v857 = vsel %vm809, %v840, -inf
        %v858 = vsel %vm810, %v842, -inf
        %v859 = vld [vmem:[%s338] sm:$0xff]
        %v860 = vld [vmem:[%s338 + $0x8] sm:$0xff]
        %v861 = vld [vmem:[%s338 + $0x10] sm:$0xff]
        %v862 = vld [vmem:[%s338 + $0x18] sm:$0xff]
        %v863 = vld [vmem:[%s338 + $0x20] sm:$0xff]
        %v864 = vld [vmem:[%s338 + $0x28] sm:$0xff]
        %v865 = vld [vmem:[%s338 + $0x30] sm:$0xff]
        %v866 = vld [vmem:[%s338 + $0x38] sm:$0xff]
        %v867 = vld [vmem:[%s338 + $0x40] sm:$0xff]
        %v868 = vld [vmem:[%s338 + $0x48] sm:$0xff]
        %v869 = vld [vmem:[%s338 + $0x50] sm:$0xff]
        %v870 = vld [vmem:[%s338 + $0x58] sm:$0xff]
        %v871 = vld [vmem:[%s338 + $0x60] sm:$0xff]
        %v872 = vld [vmem:[%s338 + $0x68] sm:$0xff]
        %v873 = vld [vmem:[%s338 + $0x70] sm:$0xff]
        %v874 = vld [vmem:[%s338 + $0x78] sm:$0xff]
        %v875 = vadd.f32 %v843, %v859
        %v876 = vadd.f32 %v844, %v860
        %v877 = vadd.f32 %v845, %v861
        %v878 = vadd.f32 %v846, %v862
        %v879 = vadd.f32 %v847, %v863
        %v880 = vadd.f32 %v848, %v864
        %v881 = vadd.f32 %v849, %v865
        %v882 = vadd.f32 %v850, %v866
        %v883 = vadd.f32 %v851, %v867
        %v884 = vadd.f32 %v852, %v868
        %v885 = vadd.f32 %v853, %v869
        %v886 = vadd.f32 %v854, %v870
        %v887 = vadd.f32 %v855, %v871
        %v888 = vadd.f32 %v856, %v872
        %v889 = vadd.f32 %v857, %v873
        %v890 = vadd.f32 %v858, %v874
        %v891 = vsel %vm602, %v875, -inf
        %892 = vmax.xlane.f32.xlu0 %v891
        %v893 = vpop.xlane.xlu0 %892
        %v894 = vsel %vm602, %v876, -inf
        %895 = vmax.xlane.f32.xlu0 %v894
        %v896 = vpop.xlane.xlu0 %895
        %v897 = vsel %vm602, %v877, -inf
        %898 = vmax.xlane.f32.xlu0 %v897
        %v899 = vpop.xlane.xlu0 %898
        %v900 = vsel %vm602, %v878, -inf
        %901 = vmax.xlane.f32.xlu0 %v900
        %v902 = vpop.xlane.xlu0 %901
        %v903 = vsel %vm602, %v879, -inf
        %904 = vmax.xlane.f32.xlu0 %v903
        %v905 = vpop.xlane.xlu0 %904
        %v906 = vsel %vm602, %v880, -inf
        %907 = vmax.xlane.f32.xlu0 %v906
        %v908 = vpop.xlane.xlu0 %907
        %v909 = vsel %vm602, %v881, -inf
        %910 = vmax.xlane.f32.xlu0 %v909
        %v911 = vpop.xlane.xlu0 %910
        %v912 = vsel %vm602, %v882, -inf
        %913 = vmax.xlane.f32.xlu0 %v912
        %v914 = vpop.xlane.xlu0 %913
        %v915 = vsel %vm602, %v883, -inf
        %916 = vmax.xlane.f32.xlu0 %v915
        %v917 = vpop.xlane.xlu0 %916
        %v918 = vsel %vm602, %v884, -inf
        %919 = vmax.xlane.f32.xlu0 %v918
        %v920 = vpop.xlane.xlu0 %919
        %v921 = vsel %vm602, %v885, -inf
        %922 = vmax.xlane.f32.xlu0 %v921
        %v923 = vpop.xlane.xlu0 %922
        %v924 = vsel %vm602, %v886, -inf
        %925 = vmax.xlane.f32.xlu0 %v924
        %v926 = vpop.xlane.xlu0 %925
        %v927 = vsel %vm602, %v887, -inf
        %928 = vmax.xlane.f32.xlu0 %v927
        %v929 = vpop.xlane.xlu0 %928
        %v930 = vsel %vm602, %v888, -inf
        %931 = vmax.xlane.f32.xlu0 %v930
        %v932 = vpop.xlane.xlu0 %931
        %v933 = vsel %vm602, %v889, -inf
        %934 = vmax.xlane.f32.xlu0 %v933
        %v935 = vpop.xlane.xlu0 %934
        %v936 = vsel %vm602, %v890, -inf
        %937 = vmax.xlane.f32.xlu0 %v936
        %v938 = vpop.xlane.xlu0 %937
        %v939 = vlaneseq
        %v940 = vand.u32 %v939, 127
        %v941 = vcvt.s32.f32 %v940
        %vm942 = vcmp.ge.f32.partialorder %v875, %v893
        %vm943 = vcmp.ge.f32.partialorder %v876, %v896
        %vm944 = vcmp.ge.f32.partialorder %v877, %v899
        %vm945 = vcmp.ge.f32.partialorder %v878, %v902
        %vm946 = vcmp.ge.f32.partialorder %v879, %v905
        %vm947 = vcmp.ge.f32.partialorder %v880, %v908
        %vm948 = vcmp.ge.f32.partialorder %v881, %v911
        %vm949 = vcmp.ge.f32.partialorder %v882, %v914
        %vm950 = vcmp.ge.f32.partialorder %v883, %v917
        %vm951 = vcmp.ge.f32.partialorder %v884, %v920
        %vm952 = vcmp.ge.f32.partialorder %v885, %v923
        %vm953 = vcmp.ge.f32.partialorder %v886, %v926
        %vm954 = vcmp.ge.f32.partialorder %v887, %v929
        %vm955 = vcmp.ge.f32.partialorder %v888, %v932
        %vm956 = vcmp.ge.f32.partialorder %v889, %v935
        %vm957 = vcmp.ge.f32.partialorder %v890, %v938
        %v958 = vsel %vm942, %v941, 16.0
        %v959 = vsel %vm943, %v941, 16.0
        %v960 = vsel %vm944, %v941, 16.0
        %v961 = vsel %vm945, %v941, 16.0
        %v962 = vsel %vm946, %v941, 16.0
        %v963 = vsel %vm947, %v941, 16.0
        %v964 = vsel %vm948, %v941, 16.0
        %v965 = vsel %vm949, %v941, 16.0
        %v966 = vsel %vm950, %v941, 16.0
        %v967 = vsel %vm951, %v941, 16.0
        %v968 = vsel %vm952, %v941, 16.0
        %v969 = vsel %vm953, %v941, 16.0
        %v970 = vsel %vm954, %v941, 16.0
        %v971 = vsel %vm955, %v941, 16.0
        %v972 = vsel %vm956, %v941, 16.0
        %v973 = vsel %vm957, %v941, 16.0
        %v974 = vsel %vm602, %v958, inf
        %975 = vmin.xlane.f32.xlu0 %v974
        %v976 = vpop.xlane.xlu0 %975
        %v977 = vsel %vm602, %v959, inf
        %978 = vmin.xlane.f32.xlu0 %v977
        %v979 = vpop.xlane.xlu0 %978
        %v980 = vsel %vm602, %v960, inf
        %981 = vmin.xlane.f32.xlu0 %v980
        %v982 = vpop.xlane.xlu0 %981
        %v983 = vsel %vm602, %v961, inf
        %984 = vmin.xlane.f32.xlu0 %v983
        %v985 = vpop.xlane.xlu0 %984
        %v986 = vsel %vm602, %v962, inf
        %987 = vmin.xlane.f32.xlu0 %v986
        %v988 = vpop.xlane.xlu0 %987
        %v989 = vsel %vm602, %v963, inf
        %990 = vmin.xlane.f32.xlu0 %v989
        %v991 = vpop.xlane.xlu0 %990
        %v992 = vsel %vm602, %v964, inf
        %993 = vmin.xlane.f32.xlu0 %v992
        %v994 = vpop.xlane.xlu0 %993
        %v995 = vsel %vm602, %v965, inf
        %996 = vmin.xlane.f32.xlu0 %v995
        %v997 = vpop.xlane.xlu0 %996
        %v998 = vsel %vm602, %v966, inf
        %999 = vmin.xlane.f32.xlu0 %v998
        %v1000 = vpop.xlane.xlu0 %999
        %v1001 = vsel %vm602, %v967, inf
        %1002 = vmin.xlane.f32.xlu0 %v1001
        %v1003 = vpop.xlane.xlu0 %1002
        %v1004 = vsel %vm602, %v968, inf
        %1005 = vmin.xlane.f32.xlu0 %v1004
        %v1006 = vpop.xlane.xlu0 %1005
        %v1007 = vsel %vm602, %v969, inf
        %1008 = vmin.xlane.f32.xlu0 %v1007
        %v1009 = vpop.xlane.xlu0 %1008
        %v1010 = vsel %vm602, %v970, inf
        %1011 = vmin.xlane.f32.xlu0 %v1010
        %v1012 = vpop.xlane.xlu0 %1011
        %v1013 = vsel %vm602, %v971, inf
        %1014 = vmin.xlane.f32.xlu0 %v1013
        %v1015 = vpop.xlane.xlu0 %1014
        %v1016 = vsel %vm602, %v972, inf
        %1017 = vmin.xlane.f32.xlu0 %v1016
        %v1018 = vpop.xlane.xlu0 %1017
        %v1019 = vsel %vm602, %v973, inf
        %1020 = vmin.xlane.f32.xlu0 %v1019
        %v1021 = vpop.xlane.xlu0 %1020
        %v1022 = vcvt.f32.s32.to.zero.pseudo %v976
        %v1023 = vcvt.f32.s32.to.zero.pseudo %v979
        %v1024 = vcvt.f32.s32.to.zero.pseudo %v982
        %v1025 = vcvt.f32.s32.to.zero.pseudo %v985
        %v1026 = vcvt.f32.s32.to.zero.pseudo %v988
        %v1027 = vcvt.f32.s32.to.zero.pseudo %v991
        %v1028 = vcvt.f32.s32.to.zero.pseudo %v994
        %v1029 = vcvt.f32.s32.to.zero.pseudo %v997
        %v1030 = vcvt.f32.s32.to.zero.pseudo %v1000
        %v1031 = vcvt.f32.s32.to.zero.pseudo %v1003
        %v1032 = vcvt.f32.s32.to.zero.pseudo %v1006
        %v1033 = vcvt.f32.s32.to.zero.pseudo %v1009
        %v1034 = vcvt.f32.s32.to.zero.pseudo %v1012
        %v1035 = vcvt.f32.s32.to.zero.pseudo %v1015
        %v1036 = vcvt.f32.s32.to.zero.pseudo %v1018
        %v1037 = vcvt.f32.s32.to.zero.pseudo %v1021
        %vm1038 = vcmask 7168
        %1039 = vst.msk [vmem:[%s348] sm:$0xff] %vm1038, %v1022
        %1040 = vst.msk [vmem:[%s348 + $0x8] sm:$0xff] %vm1038, %v1023
        %1041 = vst.msk [vmem:[%s348 + $0x10] sm:$0xff] %vm1038, %v1024
        %1042 = vst.msk [vmem:[%s348 + $0x18] sm:$0xff] %vm1038, %v1025
        %1043 = vst.msk [vmem:[%s348 + $0x20] sm:$0xff] %vm1038, %v1026
        %1044 = vst.msk [vmem:[%s348 + $0x28] sm:$0xff] %vm1038, %v1027
        %1045 = vst.msk [vmem:[%s348 + $0x30] sm:$0xff] %vm1038, %v1028
        %1046 = vst.msk [vmem:[%s348 + $0x38] sm:$0xff] %vm1038, %v1029
        %1047 = vst.msk [vmem:[%s348 + $0x40] sm:$0xff] %vm1038, %v1030
        %1048 = vst.msk [vmem:[%s348 + $0x48] sm:$0xff] %vm1038, %v1031
        %1049 = vst.msk [vmem:[%s348 + $0x50] sm:$0xff] %vm1038, %v1032
        %1050 = vst.msk [vmem:[%s348 + $0x58] sm:$0xff] %vm1038, %v1033
        %1051 = vst.msk [vmem:[%s348 + $0x60] sm:$0xff] %vm1038, %v1034
        %1052 = vst.msk [vmem:[%s348 + $0x68] sm:$0xff] %vm1038, %v1035
        %1053 = vst.msk [vmem:[%s348 + $0x70] sm:$0xff] %vm1038, %v1036
        %1054 = vst.msk [vmem:[%s348 + $0x78] sm:$0xff] %vm1038, %v1037
        %s1055 = sand.u32 %s167, 1
        %s1056 = scalar_lea.sflag [#allocation3], %s1055
        %s1057 = sand.u32 %s167, 1
        %s1058 = smul.addr %s1057, 32
        %s1059 = scalar_lea.vmem [#allocation2], %s1058
        %p1060 = scmp.lt.s32.totalorder %s23, 1
        %s1061 = scalar_select %p1060, %s23, 1
        %s1062 = smul.addr %s1061, 16
        %s1063 = smul.addr %s1062, 8
        %s1064 = scalar_lea.vmem %s7, %s1063
        %p1065 = scmp.lt.s32.totalorder %s23, 1
        %s1066 = scalar_select %p1065, %s23, 1
        %s1067 = smul.addr %s1066, 16
        %s1068 = smul.addr %s1067, 8
        %s1069 = scalar_lea.vmem %s8, %s1068
        // Predicated region
        $region45: #{tpu_custom_call.1} parent=43 // pred_check
          %p1070 = pneg %p177
        $region46: #{tpu_custom_call.1} parent=43 // pred_check_branch
          %1072 = sbr.rel (%p1070) target = $region48
        $region47: #{tpu_custom_call.1} parent=43 // pred_region
          %s1074 = ssub.s32 512, 512
          %1075 = vsyncadd %s1056, %s1074
          %s1076 = smul.addr %s23, 4
          %s1077 = smul.addr %s1076, 128
          %s1078 = scalar_lea.hbm %s6, %s1077
          %s1079 = sshll.u32 %s1059, 4
          %s1080 = int_to_ptr.vmem [resolvable:$true] %s1079
          %1085 = dma.vmem_to_hbm [thread:$0]  %s1080, 512, %s1078, %s1056, 128, 128, 8
        $region48: #{tpu_custom_call.1} parent=43 // pred_fallthru
          _
        // Predicated region
        $region49: #{tpu_custom_call.1} parent=43 // pred_check
          %p1086 = pneg %p203
        $region50: #{tpu_custom_call.1} parent=43 // pred_check_branch
          %1088 = sbr.rel (%p1086) target = $region52
        $region51: #{tpu_custom_call.1} parent=43 // pred_region
          _
        $region52: #{tpu_custom_call.1} parent=43 // pred_fallthru
          _
        // Predicated region
        $region53: #{tpu_custom_call.1} parent=43 // pred_check
          %p1089 = pneg %p229
        $region54: #{tpu_custom_call.1} parent=43 // pred_check_branch
          %1091 = sbr.rel (%p1089) target = $region56
        $region55: #{tpu_custom_call.1} parent=43 // pred_region
          _
        $region56: #{tpu_custom_call.1} parent=43 // pred_fallthru
          _
      $region44: #{tpu_custom_call.1} parent=5 // pred_fallthru
        _
      %p1092 = scmp.le.s32.totalorder 2, %s18
      // Predicated region
      $region57: #{tpu_custom_call.1} parent=5 // pred_check
        %p1093 = pneg %p1092
      $region58: #{tpu_custom_call.1} parent=5 // pred_check_branch
        %1095 = sbr.rel (%p1093) target = $region60
      $region59: #{tpu_custom_call.1} parent=5 // pred_region
        %s1096 = ssub.s32 %s18, 2
        // Predicated region
        $region61: #{tpu_custom_call.1} parent=59 // pred_check
          %p1097 = pneg %p183
        $region62: #{tpu_custom_call.1} parent=59 // pred_check_branch
          %1099 = sbr.rel (%p1097) target = $region64
        $region63: #{tpu_custom_call.1} parent=59 // pred_region
          %s1100 = sand.u32 %s168, 1
          %s1101 = scalar_lea.sflag [#allocation3], %s1100
          %s1102 = sand.u32 %s168, 1
          %s1103 = smul.addr %s1102, 32
          %s1104 = scalar_lea.vmem [#allocation2], %s1103
          %1105 = dma.done %s1101, 512
        $region64: #{tpu_custom_call.1} parent=59 // pred_fallthru
          _
        // Predicated region
        $region65: #{tpu_custom_call.1} parent=59 // pred_check
          %p1106 = pneg %p209
        $region66: #{tpu_custom_call.1} parent=59 // pred_check_branch
          %1108 = sbr.rel (%p1106) target = $region68
        $region67: #{tpu_custom_call.1} parent=59 // pred_region
          %p1109 = scmp.lt.s32.totalorder %s24, 1
          %s1110 = scalar_select %p1109, %s24, 1
          %s1111 = smul.addr %s1110, 16
          %s1112 = smul.addr %s1111, 8
          %s1113 = scalar_lea.vmem %s7, %s1112
        $region68: #{tpu_custom_call.1} parent=59 // pred_fallthru
          _
        // Predicated region
        $region69: #{tpu_custom_call.1} parent=59 // pred_check
          %p1114 = pneg %p235
        $region70: #{tpu_custom_call.1} parent=59 // pred_check_branch
          %1116 = sbr.rel (%p1114) target = $region72
        $region71: #{tpu_custom_call.1} parent=59 // pred_region
          %p1117 = scmp.lt.s32.totalorder %s24, 1
          %s1118 = scalar_select %p1117, %s24, 1
          %s1119 = smul.addr %s1118, 16
          %s1120 = smul.addr %s1119, 8
          %s1121 = scalar_lea.vmem %s8, %s1120
        $region72: #{tpu_custom_call.1} parent=59 // pred_fallthru
          _
      $region60: #{tpu_custom_call.1} parent=5 // pred_fallthru
        _
    $region6: #{tpu_custom_call.1} parent=1 // loop_footer
      %s22 = sadd.s32 1, %s18
    $region7: #{tpu_custom_call.1} parent=1 // loop_footer_branch
      %17 = sbr.rel target = $region3
    $region8: #{tpu_custom_call.1} parent=1 // loop_exit
      _
    %1122 = vsyncpa [#allocation3], 1
    %s1123 = scalar_lea.sflag [#allocation3], 1
    %1124 = vsyncpa %s1123, 1

</llo_original>
